<compile_context>
chip_gen: v5e
topology: v5e:2x2
jax: 0.10.0
libtpu: 0.0.40
codegen_flags: <defaults>
</compile_context>

<pallas_src>
import functools

import jax
import jax.numpy as jnp
from jax.experimental import pallas as pl
from jax.experimental.pallas import tpu as pltpu


def _round_up(v, m):
    return ((v + m - 1) // m) * m


def _linear_kernel(x_ref, w_ref, b_ref, o_ref):
    # MXU matmul with f32 accumulation + VPU bias add, all resident in VMEM.
    acc = jnp.dot(x_ref[...], w_ref[...], preferred_element_type=jnp.float32)
    o_ref[...] = (acc + b_ref[...]).astype(o_ref.dtype)


def linear_regression(x, w, b, *, tm_max=512):
    """Forward pass of nn.Linear: y = x @ W^T + b.

    x: [B, in_len]   (float32)
    w: [out_len, in_len]   (PyTorch weight layout)
    b: [out_len]
    returns: [B, out_len]
    """
    B, in_len = x.shape
    out_len = w.shape[0]

    # ---- lane/sublane-dense padding -------------------------------------
    out_pad = _round_up(max(out_len, 128), 128)          # lane-dense output
    # Batch tile: as large as fits a conservative VMEM budget, multiple of 8.
    bytes_per_row = (in_len + out_pad) * 4 * 2           # double-buffered in+out
    resident_bytes = (in_len * out_pad + out_pad) * 4    # w_t + b stay resident
    vmem_budget = 12 * 1024 * 1024                       # safe on v5e/v6e/v7x
    tm_fit = max(8, (vmem_budget - resident_bytes) // max(bytes_per_row, 1))
    tm = min(tm_max, (tm_fit // 8) * 8, _round_up(B, 8))
    tm = max(8, (tm // 8) * 8)
    b_pad = _round_up(B, tm)

    # Zero-pad operands (wrapper-side; cheap XLA ops, sliced back at the end).
    x_p = jnp.pad(x, ((0, b_pad - B), (0, 0)))
    w_t_p = jnp.pad(w.T, ((0, 0), (0, out_pad - out_len)))       # [in, out_pad]
    b_p = jnp.pad(b.reshape(1, out_len), ((0, 0), (0, out_pad - out_len)))

    grid = (b_pad // tm,)

    cost = pl.CostEstimate(
        flops=2 * b_pad * in_len * out_pad,
        transcendentals=0,
        bytes_accessed=(x_p.size + w_t_p.size + b_p.size + b_pad * out_pad) * 4,
    )

    y_pad = pl.pallas_call(
        _linear_kernel,
        out_shape=jax.ShapeDtypeStruct((b_pad, out_pad), x.dtype),
        grid_spec=pltpu.PrefetchScalarGridSpec(
            num_scalar_prefetch=0,
            grid=grid,
            in_specs=[
                # x: tiled over batch rows.
                pl.BlockSpec((tm, in_len), lambda i: (i, 0)),
                # W^T and bias: whole-array, constant index_map -> DMA'd once,
                # stay resident across grid steps.
                pl.BlockSpec((in_len, out_pad), lambda i: (0, 0)),
                pl.BlockSpec((1, out_pad), lambda i: (0, 0)),
            ],
            out_specs=pl.BlockSpec((tm, out_pad), lambda i: (i, 0)),
        ),
        compiler_params=pltpu.CompilerParams(
            dimension_semantics=("parallel",),
        ),
        cost_estimate=cost,
    )(x_p, w_t_p, b_p)

    return y_pad[:B, :out_len]


if __name__ == "__main__":
    # Module hyperparameters (small, consistent with the forward).
    batch = 2
    input_length = 32
    output_length = 8

    key = jax.random.PRNGKey(0)
    kx, kw, kb = jax.random.split(key, 3)

    # Deterministic init matching nn.Linear's U(-1/sqrt(in), 1/sqrt(in)) range.
    bound = 1.0 / jnp.sqrt(jnp.float32(input_length))
    w = jax.random.uniform(kw, (output_length, input_length), jnp.float32, -bound, bound)
    b = jax.random.uniform(kb, (output_length,), jnp.float32, -bound, bound)
    x = jax.random.normal(kx, (batch, input_length), jnp.float32)

    fwd = jax.jit(functools.partial(linear_regression))
    y = fwd(x, w, b)
    jax.block_until_ready(y)

    # Sanity check against plain-JAX reference (same math as PyTorch).
    y_ref = x @ w.T + b
    assert y.shape == (batch, output_length)
    assert jnp.allclose(y, y_ref, atol=1e-5, rtol=1e-5)

    print("KERNEL_OK")
</pallas_src>

<mosaic_0001>
module attributes {stable_mosaic.version = 11 : i64} {
  func.func @_linear_kernel(%arg0: i32, %arg1: memref<8x32xf32, #tpu.memory_space<vmem>>, %arg2: memref<32x128xf32, #tpu.memory_space<vmem>>, %arg3: memref<1x128xf32, #tpu.memory_space<vmem>>, %arg4: memref<8x128xf32, #tpu.memory_space<vmem>>) attributes {dimension_semantics = [#tpu.dimension_semantics<parallel>], iteration_bounds = array<i64: 1>, scalar_prefetch = 0 : i64, scratch_operands = 0 : i64, tpu.core_type = #tpu.core_type<tc>, window_params = [{transform_indices = @transform_0, window_bounds = array<i64: 8, 32>}, {pipeline_mode = #tpu.pipeline_mode<synchronous>, transform_indices = @transform_1, window_bounds = array<i64: 32, 128>}, {pipeline_mode = #tpu.pipeline_mode<synchronous>, transform_indices = @transform_2, window_bounds = array<i64: 1, 128>}, {transform_indices = @transform_3, window_bounds = array<i64: 8, 128>}]} {
    %c0 = arith.constant 0 : index
    %c0_0 = arith.constant 0 : index
    %0 = vector.load %arg1[%c0, %c0_0] : memref<8x32xf32, #tpu.memory_space<vmem>>, vector<8x32xf32>
    %c0_1 = arith.constant 0 : index
    %c0_2 = arith.constant 0 : index
    %1 = vector.load %arg2[%c0_1, %c0_2] : memref<32x128xf32, #tpu.memory_space<vmem>>, vector<32x128xf32>
    %cst = arith.constant dense<0.000000e+00> : vector<8x128xf32>
    %2 = tpu.matmul %0, %1, %cst {dimension_numbers = #tpu.dot_dimension_numbers<[1], [0], [0], [1], [0, 0, 1, 1], [], []>} : vector<8x32xf32>, vector<32x128xf32>, vector<8x128xf32> -> vector<8x128xf32>
    %c0_3 = arith.constant 0 : index
    %c0_4 = arith.constant 0 : index
    %3 = vector.load %arg3[%c0_3, %c0_4] : memref<1x128xf32, #tpu.memory_space<vmem>>, vector<1x128xf32>
    %4 = vector.broadcast %3 : vector<1x128xf32> to vector<8x128xf32>
    %5 = arith.addf %2, %4 : vector<8x128xf32>
    %c0_5 = arith.constant 0 : index
    %c0_6 = arith.constant 0 : index
    %6 = vector.load %arg4[%c0_5, %c0_6] : memref<8x128xf32, #tpu.memory_space<vmem>>, vector<8x128xf32>
    tpu.vector_store %arg4[%c0_5, %c0_6], %5 {strides = array<i32>} : memref<8x128xf32, #tpu.memory_space<vmem>>, vector<8x128xf32>,
    return
  }
  func.func @transform_0(%arg0: i32) -> (i32, i32) {
    %c0_i32 = arith.constant 0 : i32
    %c0_i32_0 = arith.constant 0 : i32
    return %arg0, %c0_i32 : i32, i32
  }
  func.func @transform_1(%arg0: i32) -> (i32, i32) {
    %c0_i32 = arith.constant 0 : i32
    %c0_i32_0 = arith.constant 0 : i32
    %c0_i32_1 = arith.constant 0 : i32
    return %c0_i32, %c0_i32_0 : i32, i32
  }
  func.func @transform_2(%arg0: i32) -> (i32, i32) {
    %c0_i32 = arith.constant 0 : i32
    %c0_i32_0 = arith.constant 0 : i32
    %c0_i32_1 = arith.constant 0 : i32
    return %c0_i32, %c0_i32_0 : i32, i32
  }
  func.func @transform_3(%arg0: i32) -> (i32, i32) {
    %c0_i32 = arith.constant 0 : i32
    %c0_i32_0 = arith.constant 0 : i32
    return %arg0, %c0_i32 : i32, i32
  }
}

</mosaic_0001>

<llo_original>
// kernel: linear_regression.1
$region0: #{linear_regression.1}
  #allocation0 [shape = 'u32[]', space=smem, size = 0x4, offset = 0x4, fixed_abs, tag = 'smem constant byte address 0x4 - core index']
  #allocation1 [shape = 'u32[72,128]{1,0:T(1,128)}', space=vmem, size = 0x9000, scoped, tag = 'internal scratch']
  %s0 = inlined_call_operand.vmem [shape: f32[8,32], index: 0, kind: input, shape index: {}]
  %s1 = inlined_call_operand.vmem [shape: f32[32,128], index: 1, kind: input, shape index: {}]
  %s2 = inlined_call_operand.vmem [shape: f32[1,128], index: 2, kind: input, shape index: {}]
  %s3 = inlined_call_operand.vmem [shape: f32[8,128], index: 3, kind: output, shape index: {}]
  %s4 = sld [smem:[#allocation0]]
  $region22: #{linear_regression.1} parent=0
    _
  %s6 = ssub.s32 1, %s4
  %s7 = scalar_select 0, %s6, %s4
  // Predicated region
  $region2: #{linear_regression.1} parent=0 // pred_check
    _
  $region3: #{linear_regression.1} parent=0 // pred_check_branch
    %9 = sbr.rel (0) target = $region5
  $region4: #{linear_regression.1} parent=0 // pred_region
    _
  $region5: #{linear_regression.1} parent=0 // pred_fallthru
    _
  // Predicated region
  $region6: #{linear_regression.1} parent=0 // pred_check
    _
  $region7: #{linear_regression.1} parent=0 // pred_check_branch
    %11 = sbr.rel (0) target = $region9
  $region8: #{linear_regression.1} parent=0 // pred_region
    _
  $region9: #{linear_regression.1} parent=0 // pred_fallthru
    _
  // Predicated region
  $region10: #{linear_regression.1} parent=0 // pred_check
    _
  $region11: #{linear_regression.1} parent=0 // pred_check_branch
    %13 = sbr.rel (0) target = $region13
  $region12: #{linear_regression.1} parent=0 // pred_region
    _
  $region13: #{linear_regression.1} parent=0 // pred_fallthru
    _
  %v14 = vld [vmem:[%s0] sm:$0xff]
  %v15 = vld [vmem:[%s1] sm:$0xff]
  %v16 = vld [vmem:[%s1 + $0x8] sm:$0xff]
  %v17 = vld [vmem:[%s1 + $0x10] sm:$0xff]
  %v18 = vld [vmem:[%s1 + $0x18] sm:$0xff]
  %v19 = vld [vmem:[%s2] sm:$0x1]
  %v21 = vperm.slane %v19, 0
  %vm23 = vcmask 261120
  %v25 = vsel %vm23, %v14, 0
  %27 = vmatpush.msra.mxu0 0.0
  %28 = vmatpush.msra.mxu0 0.0
  %29 = vmatpush.msra.mxu0 0.0
  %30 = vmatpush.msra.mxu0 0.0
  %31 = vmatpush.msra.mxu0 0.0
  %32 = vmatpush.msra.mxu0 0.0
  %33 = vmatpush.msra.mxu0 0.0
  %34 = vmatpush.msra.mxu0 0.0
  %35 = vmatpush.msra.mxu0 0.0
  %36 = vmatpush.msra.mxu0 0.0
  %37 = vmatpush.msra.mxu0 0.0
  %38 = vmatpush.msra.mxu0 0.0
  %39 = vmatpush.msra.mxu0 %v18
  %40 = vmatpush.msra.mxu0 %v17
  %41 = vmatpush.msra.mxu0 %v16
  %42 = vmatpush.msra.mxu0 %v15
  %43 = vmatmul.f32.gmra.mxu0 %v25
  %v44 = vpop.f32.mrf.mxu0
  %v45 = vadd.f32 %v21, %v44
  %46 = vdwg.mxu0
  %47 = vst [vmem:[%s3] sm:$0xff] %v45
  // Predicated region
  $region14: #{linear_regression.1} parent=0 // pred_check
    _
  $region15: #{linear_regression.1} parent=0 // pred_check_branch
    %49 = sbr.rel (0) target = $region17
  $region16: #{linear_regression.1} parent=0 // pred_region
    _
  $region17: #{linear_regression.1} parent=0 // pred_fallthru
    _
  // Predicated region
  $region18: #{linear_regression.1} parent=0 // pred_check
    _
  $region19: #{linear_regression.1} parent=0 // pred_check_branch
    %51 = sbr.rel (0) target = $region21
  $region20: #{linear_regression.1} parent=0 // pred_region
    _
  $region21: #{linear_regression.1} parent=0 // pred_fallthru
    _

</llo_original>
